<compile_context>
chip_gen: v6e
topology: v6e:2x2x1
jax: 0.10.0
libtpu: 0.0.40
codegen_flags: <defaults>
</compile_context>

<pallas_src>
import math

import jax
import jax.numpy as jnp
from jax.experimental import pallas as pl
from jax.experimental.pallas import tpu as pltpu

# ~2 MiB of *bytes* per array per block (in + out, each double-buffered).
_TARGET_BLOCK_BYTES = 2 * 1024 * 1024
# Candidate lane widths (large multiples of 128 preferred: lane-dense,
# unmasked full-width stores and few, large DMA descriptors).
_LANE_CANDIDATES = (4096, 2048, 1024, 512, 256, 128)
_INV_SQRT2 = 1.0 / math.sqrt(2.0)


def _round_up(a: int, m: int) -> int:
    return ((a + m - 1) // m) * m


def _gelu_kernel(x_ref, o_ref):
    # Upcast to f32 (mirrors the `unet_needs_upcast` branch), exact erf GELU,
    # cast back to the output dtype on store.
    x = x_ref[...].astype(jnp.float32)
    y = jnp.float32(0.5) * x * (
        jnp.float32(1.0) + jax.lax.erf(x * jnp.float32(_INV_SQRT2))
    )
    o_ref[...] = y.astype(o_ref.dtype)


def _gelu_jnp(x):
    """Plain-XLA exact GELU (f32 compute, cast back). Used for ragged sizes."""
    xf = x.astype(jnp.float32)
    return (0.5 * xf * (1.0 + jax.lax.erf(xf * _INV_SQRT2))).astype(x.dtype)


def _gelu_2d(x2d: jax.Array, *, donate: bool = False) -> jax.Array:
    rows, lanes = x2d.shape
    itemsize = jnp.dtype(x2d.dtype).itemsize

    # Row-block sized for ~2 MiB of bytes per block; multiples of 32 sublanes
    # so f32/bf16/fp16 packed tiles are all aligned.
    block_elems = max(_TARGET_BLOCK_BYTES // itemsize, 32 * 128)
    block_rows = max(block_elems // lanes, 8)
    if block_rows >= 32:
        block_rows = (block_rows // 32) * 32

    if block_rows >= rows:
        if rows >= 64:
            # Whole tensor would fit one block: split into 2 blocks so both
            # v7x TensorCores get work under dimension_semantics=("parallel",).
            block_rows = _round_up(pl.cdiv(rows, 2), 32)
        else:
            # Tiny tensor: a block equal to the full extent along a dim is
            # always legal regardless of the (8, 128) divisibility rule.
            block_rows = rows
    else:
        # Nudge the grid toward an even block count (balanced 2-TC split on
        # v7x); halving also shrinks any residual odd-count imbalance.
        if pl.cdiv(rows, block_rows) % 2 == 1 and block_rows >= 64:
            block_rows //= 2

    grid = (pl.cdiv(rows, block_rows),)

    # in + out, double-buffered, plus headroom for f32 compute temporaries.
    block_bytes = block_rows * lanes * itemsize
    vmem_limit = int(min(max(8 * block_bytes, 16 * 1024 * 1024),
                         32 * 1024 * 1024))

    return pl.pallas_call(
        _gelu_kernel,
        out_shape=jax.ShapeDtypeStruct((rows, lanes), x2d.dtype),
        grid_spec=pltpu.PrefetchScalarGridSpec(
            num_scalar_prefetch=0,
            grid=grid,
            in_specs=[pl.BlockSpec((block_rows, lanes), lambda i: (i, 0))],
            out_specs=pl.BlockSpec((block_rows, lanes), lambda i: (i, 0)),
        ),
        compiler_params=pltpu.CompilerParams(
            dimension_semantics=("parallel",),
            vmem_limit_bytes=vmem_limit,
        ),
        input_output_aliases={0: 0} if donate else {},
    )(x2d)


def gelu_hijack(x: jax.Array, *, donate: bool = False) -> jax.Array:
    """Elementwise exact (erf) GELU, computed in f32, returned in x.dtype.

    Matches GELUHijack.forward: the upcast branch (x.float() -> GELU -> cast
    back to the UNet dtype); for f32 inputs it equals the non-upcast branch.

    Set donate=True only when the caller donates x (e.g. jit donate_argnums):
    it aliases the output onto the input buffer and avoids an extra
    activation-sized allocation.
    """
    orig_shape = x.shape
    orig_dtype = x.dtype
    n = x.size
    if n == 0:
        return x

    flat = x.reshape(-1)

    # Pick the widest lane dimension that divides n exactly (always possible
    # for real UNet activations, whose element counts are multiples of 128).
    lanes = None
    for cand in _LANE_CANDIDATES:
        if n % cand == 0:
            lanes = cand
            break

    if lanes is not None:
        out2d = _gelu_2d(flat.reshape(n // lanes, lanes), donate=donate)
        return out2d.reshape(orig_shape)

    # Ragged element count (n % 128 != 0): never happens for UNet GEGLU
    # activations. A standalone Pallas call would need pad/slice or concat
    # repacking (2-3x HBM traffic); plain jnp lets XLA emit one fused
    # elementwise kernel at the 1x-traffic roofline instead, with identical
    # numerics (f32 erf GELU, cast back).
    return _gelu_jnp(x)


def _gelu_ref(x):
    xf = x.astype(jnp.float32)
    return (0.5 * xf * (1.0 + jax.lax.erf(xf / math.sqrt(2.0)))).astype(x.dtype)


if __name__ == "__main__":
    key = jax.random.PRNGKey(0)

    # NCHW activation, as would come out of a UNet conv block.
    x = jax.random.normal(key, (2, 4, 16, 16), dtype=jnp.float32)
    out = gelu_hijack(x)
    jax.block_until_ready(out)
    ref = _gelu_ref(x)
    assert out.shape == x.shape and out.dtype == x.dtype
    assert jnp.allclose(out, ref, atol=1e-5, rtol=1e-5)

    # bf16 path (upcast-to-f32 branch of the hijack).
    xb = jax.random.normal(jax.random.PRNGKey(1), (2, 4, 16, 16)).astype(jnp.bfloat16)
    outb = gelu_hijack(xb)
    jax.block_until_ready(outb)
    assert outb.dtype == jnp.bfloat16
    assert jnp.allclose(outb.astype(jnp.float32), _gelu_ref(xb).astype(jnp.float32),
                        atol=1e-2, rtol=1e-2)

    # Shape whose row count (64) triggers the 2-block split (both TCs on v7x)
    # and exercises index_map block index > 0.
    xg = jax.random.normal(jax.random.PRNGKey(3), (2, 4, 128, 256), dtype=jnp.float32)
    outg = gelu_hijack(xg)
    jax.block_until_ready(outg)
    assert jnp.allclose(outg, _gelu_ref(xg), atol=1e-5, rtol=1e-5)

    # Odd element count exercises the (rare) ragged fallback path.
    xo = jax.random.normal(jax.random.PRNGKey(2), (3, 5, 7), dtype=jnp.float32)
    outo = gelu_hijack(xo)
    jax.block_until_ready(outo)
    assert jnp.allclose(outo, _gelu_ref(xo), atol=1e-5, rtol=1e-5)

    print("KERNEL_OK")
</pallas_src>

<mosaic_0001>
module attributes {stable_mosaic.version = 11 : i64} {
  func.func @_gelu_kernel(%arg0: i32, %arg1: memref<1x2048xf32, #tpu.memory_space<vmem>>, %arg2: memref<1x2048xf32, #tpu.memory_space<vmem>>) attributes {dimension_semantics = [#tpu.dimension_semantics<parallel>], iteration_bounds = array<i64: 1>, scalar_prefetch = 0 : i64, scratch_operands = 0 : i64, tpu.core_type = #tpu.core_type<tc>, window_params = [{transform_indices = @transform_0, window_bounds = array<i64: 1, 2048>}, {transform_indices = @transform_1, window_bounds = array<i64: 1, 2048>}]} {
    %c0 = arith.constant 0 : index
    %c0_0 = arith.constant 0 : index
    %0 = vector.load %arg1[%c0, %c0_0] : memref<1x2048xf32, #tpu.memory_space<vmem>>, vector<1x2048xf32>
    %cst = arith.constant 5.000000e-01 : f32
    %1 = vector.broadcast %cst : f32 to vector<1x2048xf32>
    %2 = arith.mulf %1, %0 : vector<1x2048xf32>
    %cst_1 = arith.constant 0.707106769 : f32
    %3 = vector.broadcast %cst_1 : f32 to vector<1x2048xf32>
    %4 = arith.mulf %0, %3 : vector<1x2048xf32>
    %5 = math.erf %4 : vector<1x2048xf32>
    %cst_2 = arith.constant 1.000000e+00 : f32
    %6 = vector.broadcast %cst_2 : f32 to vector<1x2048xf32>
    %7 = arith.addf %6, %5 : vector<1x2048xf32>
    %8 = arith.mulf %2, %7 : vector<1x2048xf32>
    %c0_3 = arith.constant 0 : index
    %c0_4 = arith.constant 0 : index
    %9 = vector.load %arg2[%c0_3, %c0_4] : memref<1x2048xf32, #tpu.memory_space<vmem>>, vector<1x2048xf32>
    tpu.vector_store %arg2[%c0_3, %c0_4], %8 {strides = array<i32>} : memref<1x2048xf32, #tpu.memory_space<vmem>>, vector<1x2048xf32>,
    return
  }
  func.func @transform_0(%arg0: i32) -> (i32, i32) {
    %c0_i32 = arith.constant 0 : i32
    %c0_i32_0 = arith.constant 0 : i32
    return %arg0, %c0_i32 : i32, i32
  }
  func.func @transform_1(%arg0: i32) -> (i32, i32) {
    %c0_i32 = arith.constant 0 : i32
    %c0_i32_0 = arith.constant 0 : i32
    return %arg0, %c0_i32 : i32, i32
  }
}

</mosaic_0001>

<llo_original>
// kernel: tpu_custom_call.1
$region0: #{tpu_custom_call.1}
  #allocation0 [shape = 'u32[]', space=smem, size = 0x4, offset = 0x4, fixed_abs, tag = 'smem constant byte address 0x4 - core index']
  #allocation1 [shape = 'u32[144,128]{1,0:T(1,128)}', space=vmem, size = 0x12000, scoped, tag = 'internal scratch']
  %s0 = inlined_call_operand.hbm [shape: f32[1,2048], index: 0, kind: input, shape index: {}]
  %s1 = inlined_call_operand.hbm [shape: f32[1,2048], index: 1, kind: output, shape index: {}]
  %s2 = sld [smem:[#allocation0]]
  $region18: #{tpu_custom_call.1} parent=0
    _
  %s4 = ssub.s32 1, %s2
  %s5 = scalar_select 0, %s4, %s2
  $region1: #{tpu_custom_call.1} parent=0
    #allocation2 [shape = 'u8[8192]{0}', space=vmem, size = 0x2000, scoped, tag = 'input window, operand 0, single buffered']
    #allocation3 [shape = 's32[1]{0}', space=sflag, size = 0x4, scoped, tag = 'scoped memory for tpu_custom_call.1']
    #allocation4 [shape = 's32[1]{0}', space=sflag, size = 0x4, scoped, tag = 'scoped memory for tpu_custom_call.1']
    #allocation5 [shape = 'u8[8192]{0}', space=vmem, size = 0x2000, scoped, tag = 'output window, operand 0, single buffered']
    %6 = vsyncpa [#allocation3], 0
    %7 = vsyncpa [#allocation4], 0
    // Predicated region
    $region2: #{tpu_custom_call.1} parent=1 // pred_check
      _
    $region3: #{tpu_custom_call.1} parent=1 // pred_check_branch
      %9 = sbr.rel (0) target = $region5
    $region4: #{tpu_custom_call.1} parent=1 // pred_region
      %s11 = ssub.s32 256, 256
      %12 = vsyncadd [#allocation3], %s11
      %s14 = sshll.u32 [#allocation2], 4
      %s15 = int_to_ptr.vmem [resolvable:$true] %s14
      %17 = dma.hbm_to_vmem [thread:$0]  %s0, 256, %s15, [#allocation3]
    $region5: #{tpu_custom_call.1} parent=1 // pred_fallthru
      _
    // Predicated region
    $region6: #{tpu_custom_call.1} parent=1 // pred_check
      _
    $region7: #{tpu_custom_call.1} parent=1 // pred_check_branch
      %19 = sbr.rel (0) target = $region9
    $region8: #{tpu_custom_call.1} parent=1 // pred_region
      %20 = dma.done [#allocation3], 256
    $region9: #{tpu_custom_call.1} parent=1 // pred_fallthru
      _
    %v21 = vld [vmem:[#allocation2] sm:$0xff]
    %v22 = vld [vmem:[#allocation2 + $0x8] sm:$0xff]
    %v23 = vmul.f32 %v21, 0.5
    %v24 = vmul.f32 %v22, 0.5
    %v25 = vmul.f32 %v21, 0.70710677
    %v26 = vmul.f32 %v22, 0.70710677
    %v27 = verf.f32.pop %v25
    %v28 = verf.f32.pop %v26
    %v29 = vadd.f32 %v27, 1.0
    %v30 = vadd.f32 %v28, 1.0
    %v31 = vmul.f32 %v23, %v29
    %v32 = vmul.f32 %v24, %v30
    %33 = vst [vmem:[#allocation5] sm:$0xff] %v31
    %34 = vst [vmem:[#allocation5 + $0x8] sm:$0xff] %v32
    // Predicated region
    $region10: #{tpu_custom_call.1} parent=1 // pred_check
      _
    $region11: #{tpu_custom_call.1} parent=1 // pred_check_branch
      %36 = sbr.rel (0) target = $region13
    $region12: #{tpu_custom_call.1} parent=1 // pred_region
      %s38 = ssub.s32 256, 256
      %39 = vsyncadd [#allocation4], %s38
      %s41 = sshll.u32 [#allocation5], 4
      %s42 = int_to_ptr.vmem [resolvable:$true] %s41
      %44 = dma.vmem_to_hbm [thread:$0]  %s42, 256, %s1, [#allocation4]
    $region13: #{tpu_custom_call.1} parent=1 // pred_fallthru
      _
    // Predicated region
    $region14: #{tpu_custom_call.1} parent=1 // pred_check
      _
    $region15: #{tpu_custom_call.1} parent=1 // pred_check_branch
      %46 = sbr.rel (0) target = $region17
    $region16: #{tpu_custom_call.1} parent=1 // pred_region
      %47 = dma.done [#allocation4], 256
    $region17: #{tpu_custom_call.1} parent=1 // pred_fallthru
      _
    %48 = vsyncpa [#allocation3], 1
    %49 = vsyncpa [#allocation4], 1

</llo_original>
